<compile_context>
chip_gen: v6e
topology: v6e:2x2x1
jax: 0.10.0
libtpu: 0.0.40
codegen_flags: <defaults>
</compile_context>

<pallas_src>
import jax
import jax.numpy as jnp
from jax.experimental import pallas as pl
from jax.experimental.pallas import tpu as pltpu

_LANES = 128
_SUBLANES = 8


def _dice_partials_kernel(n_ref, x_ref, t_ref, out_ref, num_acc, den_acc):
    """Per-core partials: [sum(sig(x)*trunc(t)), sum(sig(x)) + sum(trunc(t))]."""
    c = pl.program_id(0)        # core-split axis ("parallel")
    j = pl.program_id(1)        # sequential reduction axis ("arbitrary")
    cpc = pl.num_programs(1)    # chunks per core

    @pl.when(j == 0)
    def _():
        num_acc[...] = jnp.zeros_like(num_acc)
        den_acc[...] = jnp.zeros_like(den_acc)

    tile_rows, lanes = x_ref.shape
    n = n_ref[0]
    # Elements of real data remaining starting at this (logical, unclamped)
    # tile.  int32 math: valid below ~2^31 elements (n itself is int32).
    # rem <= 0 for clamped phantom tiles, so they contribute nothing.
    row0 = (c * cpc + j) * tile_rows
    rem = n - row0 * lanes

    def sig_and_tgt():
        x = x_ref[...].astype(jnp.float32)
        # sigmoid(x) == 0.5*tanh(0.5*x)+0.5: one EUP transcendental.
        s = 0.5 * jnp.tanh(0.5 * x) + 0.5
        t = t_ref[...]
        if jnp.issubdtype(t_ref.dtype, jnp.floating):
            # PyTorch targets.long(): truncation toward zero.
            t = jnp.trunc(t.astype(jnp.float32))
        else:
            t = t.astype(jnp.float32)   # bool / int8 / int32 targets
        return s, t

    def vreg_sum(v):
        # (tile_rows,128) -> (8,128): vreg-aligned VALU adds only; cross-lane
        # XLU reduction happens once per core in the finalize block.
        return jnp.sum(v.reshape(-1, _SUBLANES, _LANES), axis=0)

    full = rem >= tile_rows * lanes

    @pl.when(full)
    def _():
        # Hot path: no iota / mask / where work.
        s, t = sig_and_tgt()
        num_acc[...] += vreg_sum(s * t)
        den_acc[...] += vreg_sum(s + t)

    @pl.when(jnp.logical_not(full))
    def _():
        # Tail / phantom tiles only: mask the lane pad, Pallas partial-block
        # padding and phantom-tile re-reads in one shot.
        s, t = sig_and_tgt()
        rr = jax.lax.broadcasted_iota(jnp.int32, (tile_rows, lanes), 0)
        ll = jax.lax.broadcasted_iota(jnp.int32, (tile_rows, lanes), 1)
        mask = rr * lanes + ll < rem
        s = jnp.where(mask, s, 0.0)
        t = jnp.where(mask, t, 0.0)
        num_acc[...] += vreg_sum(s * t)
        den_acc[...] += vreg_sum(s + t)

    @pl.when(j == cpc - 1)
    def _():
        # Single cross-lane reduction per core, written to the SMEM partial row.
        out_ref[0, 0] = jnp.sum(num_acc[...])
        out_ref[0, 1] = jnp.sum(den_acc[...])


def _tpu_generation():
    """(is_v7x, physical VMEM bytes) -- best-effort, safe fallbacks."""
    kind = ""
    try:
        kind = str(getattr(jax.devices()[0], "device_kind", "")).lower()
    except Exception:
        pass
    is_v7 = ("v7" in kind) or ("tpu7" in kind) or ("7x" in kind)
    vmem_physical = (64 << 20) if is_v7 else (128 << 20)
    try:
        info = pltpu.get_tpu_info()
        vmem_physical = int(getattr(info, "vmem_capacity_bytes", vmem_physical))
    except Exception:
        pass
    return is_v7, vmem_physical


def dice_loss(inputs, targets, smooth=1.0, *, tile_rows=4096):
    """Pallas TPU DiceLoss.forward: 1 - (2*I + s) / (sum_in + sum_tg + s)."""
    x = jnp.ravel(inputs)
    t = jnp.ravel(targets)
    n = int(x.shape[0])

    is_v7, vmem_physical = _tpu_generation()

    # Minimal pad so the (rows, 128) view is a free reshape and rows >= 8.
    # (<= 1023 extra elements, masked in-kernel; no tile-granularity padding.)
    rows = max(pl.cdiv(n, _LANES), _SUBLANES)
    padded = rows * _LANES
    if padded != n:
        x = jnp.pad(x, (0, padded - n))
        t = jnp.pad(t, (0, padded - n))
    x2 = x.reshape(rows, _LANES)
    t2 = t.reshape(rows, _LANES)

    # Big tiles amortize the ~0.35us/step overhead; multiple of 16 keeps
    # sub-32-bit dtypes on their packed sublane layout; generation-aware cap.
    tr_cap = 4096 if is_v7 else 8192
    mult = 16 if min(x2.dtype.itemsize, t2.dtype.itemsize) < 4 else _SUBLANES
    tr_req = min(int(tile_rows), rows, tr_cap)
    tr = (tr_req // mult) * mult
    if tr < _SUBLANES:
        tr = (tr_req // _SUBLANES) * _SUBLANES
    tr = max(tr, _SUBLANES)

    total_tiles = pl.cdiv(rows, tr)
    # v7x: split the reduction across both TensorCores; single-TC v5e/v6e keep
    # one core (no phantom tiles / wasted HBM re-reads).
    num_cores = 2 if (is_v7 and total_tiles > 1) else 1
    cpc = pl.cdiv(total_tiles, num_cores)

    def data_map(c, j, n_ref):
        # Phantom tiles (odd total_tiles on the 2-core split) clamp to the last
        # real tile; their contribution is fully masked in-kernel (rem <= 0).
        return (jnp.minimum(c * cpc + j, total_tiles - 1), 0)

    def build_in_specs(use_buffered):
        if use_buffered:
            return [
                pl.BlockSpec((tr, _LANES), data_map, pipeline_mode=pl.Buffered(3)),
                pl.BlockSpec((tr, _LANES), data_map, pipeline_mode=pl.Buffered(3)),
            ]
        return [
            pl.BlockSpec((tr, _LANES), data_map),
            pl.BlockSpec((tr, _LANES), data_map),
        ]

    def run(use_buffered):
        n_buf = 3 if use_buffered else 2
        est_vmem = (n_buf * tr * _LANES * (x2.dtype.itemsize + t2.dtype.itemsize)
                    + 8 * tr * _LANES * 4)          # body temporaries (s, t, prods)
        # Leave headroom below physical VMEM: ~48 MiB on v7x (64 MiB phys),
        # up to ~100 MiB on v5e/v6e (128 MiB phys).
        vmem_soft_cap = min((48 << 20) if is_v7 else (100 << 20),
                            vmem_physical - (8 << 20))
        vmem_limit = None
        if est_vmem > (12 << 20):
            vmem_limit = int(min(max(est_vmem, 32 << 20), vmem_soft_cap))

        return pl.pallas_call(
            _dice_partials_kernel,
            out_shape=jax.ShapeDtypeStruct((num_cores, 2), jnp.float32),
            grid_spec=pltpu.PrefetchScalarGridSpec(
                num_scalar_prefetch=1,
                grid=(num_cores, cpc),
                in_specs=build_in_specs(use_buffered),
                out_specs=pl.BlockSpec((1, 2), lambda c, j, n_ref: (c, 0),
                                       memory_space=pltpu.SMEM),
                scratch_shapes=[pltpu.VMEM((_SUBLANES, _LANES), jnp.float32)] * 2,
            ),
            compiler_params=pltpu.CompilerParams(
                dimension_semantics=("parallel", "arbitrary"),
                vmem_limit_bytes=vmem_limit,
            ),
        )(jnp.array([n], jnp.int32), x2, t2)

    want_buffered = is_v7 and hasattr(pl, "Buffered")
    if want_buffered:
        try:
            partials = run(True)
        except Exception:
            partials = run(False)   # fallback if Buffered(3) unsupported
    else:
        partials = run(False)

    inter = jnp.sum(partials[:, 0])
    den = jnp.sum(partials[:, 1])
    dice = (2.0 * inter + smooth) / (den + smooth)
    return (1.0 - dice).astype(jnp.float32)


def _dice_loss_ref(inputs, targets, smooth=1.0):
    s = jax.nn.sigmoid(jnp.ravel(inputs).astype(jnp.float32))
    t = jnp.ravel(targets).astype(jnp.int32).astype(jnp.float32)
    inter = jnp.sum(s * t)
    dice = (2.0 * inter + smooth) / (jnp.sum(s) + jnp.sum(t) + smooth)
    return 1.0 - dice


if __name__ == "__main__":
    key = jax.random.PRNGKey(0)
    k1, k2, k3, k4 = jax.random.split(key, 4)

    # NCHW logits + binary float mask (flattened inside the op, as the module does).
    inputs = jax.random.normal(k1, (2, 4, 16, 16), dtype=jnp.float32)
    targets = (jax.random.uniform(k2, (2, 4, 16, 16)) > 0.5).astype(jnp.float32)
    out = dice_loss(inputs, targets)
    jax.block_until_ready(out)
    ref = _dice_loss_ref(inputs, targets)
    assert jnp.allclose(out, ref, atol=2e-5, rtol=2e-5), (out, ref)

    # Ragged element count: exercises the masked tail path.
    x_odd = jax.random.normal(k3, (3, 5, 7, 11), dtype=jnp.float32)
    t_odd = (jax.random.uniform(k4, (3, 5, 7, 11)) > 0.5).astype(jnp.float32)
    out2 = dice_loss(x_odd, t_odd, tile_rows=8)
    ref2 = _dice_loss_ref(x_odd, t_odd)
    assert jnp.allclose(out2, ref2, atol=2e-5, rtol=2e-5), (out2, ref2)

    # Odd tile count: exercises the clamped "phantom" tile on the v7x 2-core split.
    x3 = jax.random.normal(k1, (3, 1024), dtype=jnp.float32)
    t3 = (jax.random.uniform(k2, (3, 1024)) > 0.5).astype(jnp.float32)
    out3 = dice_loss(x3, t3, tile_rows=8)
    ref3 = _dice_loss_ref(x3, t3)
    assert jnp.allclose(out3, ref3, atol=2e-5, rtol=2e-5), (out3, ref3)

    # Native narrow dtypes straight into the kernel (bandwidth win):
    # bf16 logits + int8 mask = 3 B/elem instead of 8 B/elem.
    x5 = jax.random.normal(k3, (2, 4, 32, 16), dtype=jnp.bfloat16)
    t5 = (jax.random.uniform(k4, (2, 4, 32, 16)) > 0.5).astype(jnp.int8)
    out5 = dice_loss(x5, t5)
    ref5 = _dice_loss_ref(x5, t5)
    assert jnp.allclose(out5, ref5, atol=2e-5, rtol=2e-5), (out5, ref5)

    # bf16 logits with float targets (mixed-dtype input specs).
    out6 = dice_loss(inputs.astype(jnp.bfloat16), targets)
    ref6 = _dice_loss_ref(inputs.astype(jnp.bfloat16), targets)
    assert jnp.allclose(out6, ref6, atol=2e-5, rtol=2e-5), (out6, ref6)

    print("KERNEL_OK")
</pallas_src>

<mosaic_0001>
module attributes {stable_mosaic.version = 11 : i64} {
  func.func @_dice_partials_kernel(%arg0: i32, %arg1: i32, %arg2: memref<1xi32, #tpu.memory_space<smem>>, %arg3: memref<16x128xf32, #tpu.memory_space<vmem>>, %arg4: memref<16x128xf32, #tpu.memory_space<vmem>>, %arg5: memref<1x2xf32, #tpu.memory_space<smem>>, %arg6: memref<8x128xf32, #tpu.memory_space<vmem>>, %arg7: memref<8x128xf32, #tpu.memory_space<vmem>>) attributes {dimension_semantics = [#tpu.dimension_semantics<parallel>, #tpu.dimension_semantics<arbitrary>], iteration_bounds = array<i64: 1, 1>, scalar_prefetch = 1 : i64, scratch_operands = 2 : i64, tpu.core_type = #tpu.core_type<tc>, window_params = [{transform_indices = @transform_0, window_bounds = array<i64: 16, 128>}, {transform_indices = @transform_1, window_bounds = array<i64: 16, 128>}, {transform_indices = @transform_2, window_bounds = array<i64: 1, 2>}]} {
    %c0_i32 = arith.constant 0 : i32
    %0 = arith.cmpi eq, %arg1, %c0_i32 : i32
    %1 = arith.extui %0 : i1 to i32
    %c0_i32_0 = arith.constant 0 : i32
    %2 = arith.cmpi ne, %1, %c0_i32_0 : i32
    scf.if %2 {
      %cst = arith.constant 0.000000e+00 : f32
      %18 = vector.broadcast %cst : f32 to vector<8x128xf32>
      %c0_5 = arith.constant 0 : index
      %c0_6 = arith.constant 0 : index
      %19 = vector.load %arg6[%c0_5, %c0_6] : memref<8x128xf32, #tpu.memory_space<vmem>>, vector<8x128xf32>
      tpu.vector_store %arg6[%c0_5, %c0_6], %18 {strides = array<i32>} : memref<8x128xf32, #tpu.memory_space<vmem>>, vector<8x128xf32>,
      %cst_7 = arith.constant 0.000000e+00 : f32
      %20 = vector.broadcast %cst_7 : f32 to vector<8x128xf32>
      %c0_8 = arith.constant 0 : index
      %c0_9 = arith.constant 0 : index
      %21 = vector.load %arg7[%c0_8, %c0_9] : memref<8x128xf32, #tpu.memory_space<vmem>>, vector<8x128xf32>
      tpu.vector_store %arg7[%c0_8, %c0_9], %20 {strides = array<i32>} : memref<8x128xf32, #tpu.memory_space<vmem>>, vector<8x128xf32>,
    } else {
    }
    %c0 = arith.constant 0 : index
    %3 = memref.load %arg2[%c0] : memref<1xi32, #tpu.memory_space<smem>>
    %c1_i32 = arith.constant 1 : i32
    %4 = arith.muli %arg0, %c1_i32 : i32
    %5 = arith.addi %4, %arg1 : i32
    %c16_i32 = arith.constant 16 : i32
    %6 = arith.muli %5, %c16_i32 : i32
    %c128_i32 = arith.constant 128 : i32
    %7 = arith.muli %6, %c128_i32 : i32
    %8 = arith.subi %3, %7 : i32
    %c2048_i32 = arith.constant 2048 : i32
    %9 = arith.cmpi sge, %8, %c2048_i32 : i32
    %10 = arith.extui %9 : i1 to i32
    %c0_i32_1 = arith.constant 0 : i32
    %11 = arith.cmpi ne, %10, %c0_i32_1 : i32
    scf.if %11 {
      %c0_5 = arith.constant 0 : index
      %c0_6 = arith.constant 0 : index
      %18 = vector.load %arg3[%c0_5, %c0_6] : memref<16x128xf32, #tpu.memory_space<vmem>>, vector<16x128xf32>
      %cst = arith.constant 5.000000e-01 : f32
      %19 = vector.broadcast %cst : f32 to vector<16x128xf32>
      %20 = arith.mulf %19, %18 : vector<16x128xf32>
      %21 = math.tanh %20 : vector<16x128xf32>
      %cst_7 = arith.constant 5.000000e-01 : f32
      %22 = vector.broadcast %cst_7 : f32 to vector<16x128xf32>
      %23 = arith.mulf %22, %21 : vector<16x128xf32>
      %cst_8 = arith.constant 5.000000e-01 : f32
      %24 = vector.broadcast %cst_8 : f32 to vector<16x128xf32>
      %25 = arith.addf %23, %24 : vector<16x128xf32>
      %c0_9 = arith.constant 0 : index
      %c0_10 = arith.constant 0 : index
      %26 = vector.load %arg4[%c0_9, %c0_10] : memref<16x128xf32, #tpu.memory_space<vmem>>, vector<16x128xf32>
      %cst_11 = arith.constant 0.000000e+00 : f32
      %27 = vector.broadcast %cst_11 : f32 to vector<16x128xf32>
      %28 = arith.cmpf olt, %26, %27 : vector<16x128xf32>
      %29 = math.ceil %26 : vector<16x128xf32>
      %30 = math.floor %26 : vector<16x128xf32>
      %31 = arith.select %28, %29, %30 : vector<16x128xi1>, vector<16x128xf32>
      %c0_12 = arith.constant 0 : index
      %c0_13 = arith.constant 0 : index
      %32 = vector.load %arg6[%c0_12, %c0_13] : memref<8x128xf32, #tpu.memory_space<vmem>>, vector<8x128xf32>
      %33 = arith.mulf %25, %31 : vector<16x128xf32>
      %34 = vector.shape_cast %33 : vector<16x128xf32> to vector<2x8x128xf32>
      %cst_14 = arith.constant dense<0.000000e+00> : vector<8x128xf32>
      %35 = vector.multi_reduction <add>, %34, %cst_14 [0] : vector<2x8x128xf32> to vector<8x128xf32>
      %36 = arith.addf %32, %35 : vector<8x128xf32>
      %c0_15 = arith.constant 0 : index
      %c0_16 = arith.constant 0 : index
      %37 = vector.load %arg6[%c0_15, %c0_16] : memref<8x128xf32, #tpu.memory_space<vmem>>, vector<8x128xf32>
      tpu.vector_store %arg6[%c0_15, %c0_16], %36 {strides = array<i32>} : memref<8x128xf32, #tpu.memory_space<vmem>>, vector<8x128xf32>,
      %c0_17 = arith.constant 0 : index
      %c0_18 = arith.constant 0 : index
      %38 = vector.load %arg7[%c0_17, %c0_18] : memref<8x128xf32, #tpu.memory_space<vmem>>, vector<8x128xf32>
      %39 = arith.addf %25, %31 : vector<16x128xf32>
      %40 = vector.shape_cast %39 : vector<16x128xf32> to vector<2x8x128xf32>
      %cst_19 = arith.constant dense<0.000000e+00> : vector<8x128xf32>
      %41 = vector.multi_reduction <add>, %40, %cst_19 [0] : vector<2x8x128xf32> to vector<8x128xf32>
      %42 = arith.addf %38, %41 : vector<8x128xf32>
      %c0_20 = arith.constant 0 : index
      %c0_21 = arith.constant 0 : index
      %43 = vector.load %arg7[%c0_20, %c0_21] : memref<8x128xf32, #tpu.memory_space<vmem>>, vector<8x128xf32>
      tpu.vector_store %arg7[%c0_20, %c0_21], %42 {strides = array<i32>} : memref<8x128xf32, #tpu.memory_space<vmem>>, vector<8x128xf32>,
    } else {
    }
    %true = arith.constant true
    %12 = arith.xori %9, %true : i1
    %13 = arith.extui %12 : i1 to i32
    %c0_i32_2 = arith.constant 0 : i32
    %14 = arith.cmpi ne, %13, %c0_i32_2 : i32
    scf.if %14 {
      %c0_5 = arith.constant 0 : index
      %c0_6 = arith.constant 0 : index
      %18 = vector.load %arg3[%c0_5, %c0_6] : memref<16x128xf32, #tpu.memory_space<vmem>>, vector<16x128xf32>
      %cst = arith.constant 5.000000e-01 : f32
      %19 = vector.broadcast %cst : f32 to vector<16x128xf32>
      %20 = arith.mulf %19, %18 : vector<16x128xf32>
      %21 = math.tanh %20 : vector<16x128xf32>
      %cst_7 = arith.constant 5.000000e-01 : f32
      %22 = vector.broadcast %cst_7 : f32 to vector<16x128xf32>
      %23 = arith.mulf %22, %21 : vector<16x128xf32>
      %cst_8 = arith.constant 5.000000e-01 : f32
      %24 = vector.broadcast %cst_8 : f32 to vector<16x128xf32>
      %25 = arith.addf %23, %24 : vector<16x128xf32>
      %c0_9 = arith.constant 0 : index
      %c0_10 = arith.constant 0 : index
      %26 = vector.load %arg4[%c0_9, %c0_10] : memref<16x128xf32, #tpu.memory_space<vmem>>, vector<16x128xf32>
      %cst_11 = arith.constant 0.000000e+00 : f32
      %27 = vector.broadcast %cst_11 : f32 to vector<16x128xf32>
      %28 = arith.cmpf olt, %26, %27 : vector<16x128xf32>
      %29 = math.ceil %26 : vector<16x128xf32>
      %30 = math.floor %26 : vector<16x128xf32>
      %31 = arith.select %28, %29, %30 : vector<16x128xi1>, vector<16x128xf32>
      %32 = tpu.iota {dimensions = array<i32: 0>} : vector<16x128xi32>
      %33 = tpu.iota {dimensions = array<i32: 1>} : vector<16x128xi32>
      %c128_i32_12 = arith.constant 128 : i32
      %34 = vector.broadcast %c128_i32_12 : i32 to vector<16x128xi32>
      %35 = arith.muli %32, %34 : vector<16x128xi32>
      %36 = arith.addi %35, %33 : vector<16x128xi32>
      %37 = vector.broadcast %8 : i32 to vector<16x128xi32>
      %38 = arith.cmpi slt, %36, %37 : vector<16x128xi32>
      %cst_13 = arith.constant 0.000000e+00 : f32
      %39 = vector.broadcast %cst_13 : f32 to vector<16x128xf32>
      %40 = arith.select %38, %25, %39 : vector<16x128xi1>, vector<16x128xf32>
      %cst_14 = arith.constant 0.000000e+00 : f32
      %41 = vector.broadcast %cst_14 : f32 to vector<16x128xf32>
      %42 = arith.select %38, %31, %41 : vector<16x128xi1>, vector<16x128xf32>
      %c0_15 = arith.constant 0 : index
      %c0_16 = arith.constant 0 : index
      %43 = vector.load %arg6[%c0_15, %c0_16] : memref<8x128xf32, #tpu.memory_space<vmem>>, vector<8x128xf32>
      %44 = arith.mulf %40, %42 : vector<16x128xf32>
      %45 = vector.shape_cast %44 : vector<16x128xf32> to vector<2x8x128xf32>
      %cst_17 = arith.constant dense<0.000000e+00> : vector<8x128xf32>
      %46 = vector.multi_reduction <add>, %45, %cst_17 [0] : vector<2x8x128xf32> to vector<8x128xf32>
      %47 = arith.addf %43, %46 : vector<8x128xf32>
      %c0_18 = arith.constant 0 : index
      %c0_19 = arith.constant 0 : index
      %48 = vector.load %arg6[%c0_18, %c0_19] : memref<8x128xf32, #tpu.memory_space<vmem>>, vector<8x128xf32>
      tpu.vector_store %arg6[%c0_18, %c0_19], %47 {strides = array<i32>} : memref<8x128xf32, #tpu.memory_space<vmem>>, vector<8x128xf32>,
      %c0_20 = arith.constant 0 : index
      %c0_21 = arith.constant 0 : index
      %49 = vector.load %arg7[%c0_20, %c0_21] : memref<8x128xf32, #tpu.memory_space<vmem>>, vector<8x128xf32>
      %50 = arith.addf %40, %42 : vector<16x128xf32>
      %51 = vector.shape_cast %50 : vector<16x128xf32> to vector<2x8x128xf32>
      %cst_22 = arith.constant dense<0.000000e+00> : vector<8x128xf32>
      %52 = vector.multi_reduction <add>, %51, %cst_22 [0] : vector<2x8x128xf32> to vector<8x128xf32>
      %53 = arith.addf %49, %52 : vector<8x128xf32>
      %c0_23 = arith.constant 0 : index
      %c0_24 = arith.constant 0 : index
      %54 = vector.load %arg7[%c0_23, %c0_24] : memref<8x128xf32, #tpu.memory_space<vmem>>, vector<8x128xf32>
      tpu.vector_store %arg7[%c0_23, %c0_24], %53 {strides = array<i32>} : memref<8x128xf32, #tpu.memory_space<vmem>>, vector<8x128xf32>,
    } else {
    }
    %c0_i32_3 = arith.constant 0 : i32
    %15 = arith.cmpi eq, %arg1, %c0_i32_3 : i32
    %16 = arith.extui %15 : i1 to i32
    %c0_i32_4 = arith.constant 0 : i32
    %17 = arith.cmpi ne, %16, %c0_i32_4 : i32
    scf.if %17 {
      %c0_5 = arith.constant 0 : index
      %c0_6 = arith.constant 0 : index
      %18 = vector.load %arg6[%c0_5, %c0_6] : memref<8x128xf32, #tpu.memory_space<vmem>>, vector<8x128xf32>
      %19 = vector.shape_cast %18 : vector<8x128xf32> to vector<1x8x128xf32>
      %cst = arith.constant dense<0.000000e+00> : vector<1xf32>
      %20 = vector.multi_reduction <add>, %19, %cst [1, 2] : vector<1x8x128xf32> to vector<1xf32>
      %21 = vector.shape_cast %20 : vector<1xf32> to vector<1x1x1xf32>
      %22 = vector.extract %21[0, 0, 0] : f32 from vector<1x1x1xf32>
      %c0_7 = arith.constant 0 : index
      %c0_8 = arith.constant 0 : index
      %23 = memref.load %arg5[%c0_7, %c0_8] : memref<1x2xf32, #tpu.memory_space<smem>>
      memref.store %22, %arg5[%c0_7, %c0_8] : memref<1x2xf32, #tpu.memory_space<smem>>
      %c0_9 = arith.constant 0 : index
      %c0_10 = arith.constant 0 : index
      %24 = vector.load %arg7[%c0_9, %c0_10] : memref<8x128xf32, #tpu.memory_space<vmem>>, vector<8x128xf32>
      %25 = vector.shape_cast %24 : vector<8x128xf32> to vector<1x8x128xf32>
      %cst_11 = arith.constant dense<0.000000e+00> : vector<1xf32>
      %26 = vector.multi_reduction <add>, %25, %cst_11 [1, 2] : vector<1x8x128xf32> to vector<1xf32>
      %27 = vector.shape_cast %26 : vector<1xf32> to vector<1x1x1xf32>
      %28 = vector.extract %27[0, 0, 0] : f32 from vector<1x1x1xf32>
      %c0_12 = arith.constant 0 : index
      %c1 = arith.constant 1 : index
      %29 = memref.load %arg5[%c0_12, %c1] : memref<1x2xf32, #tpu.memory_space<smem>>
      memref.store %28, %arg5[%c0_12, %c1] : memref<1x2xf32, #tpu.memory_space<smem>>
    } else {
    }
    return
  }
  func.func @transform_0(%arg0: i32, %arg1: i32, %arg2: memref<1xi32, #tpu.memory_space<smem>>) -> (i32, i32) {
    %c1_i32 = arith.constant 1 : i32
    %0 = arith.muli %arg0, %c1_i32 : i32
    %1 = arith.addi %0, %arg1 : i32
    %c0_i32 = arith.constant 0 : i32
    %2 = arith.minsi %1, %c0_i32 : i32
    %c0_i32_0 = arith.constant 0 : i32
    %c0_i32_1 = arith.constant 0 : i32
    return %2, %c0_i32_0 : i32, i32
  }
  func.func @transform_1(%arg0: i32, %arg1: i32, %arg2: memref<1xi32, #tpu.memory_space<smem>>) -> (i32, i32) {
    %c1_i32 = arith.constant 1 : i32
    %0 = arith.muli %arg0, %c1_i32 : i32
    %1 = arith.addi %0, %arg1 : i32
    %c0_i32 = arith.constant 0 : i32
    %2 = arith.minsi %1, %c0_i32 : i32
    %c0_i32_0 = arith.constant 0 : i32
    %c0_i32_1 = arith.constant 0 : i32
    return %2, %c0_i32_0 : i32, i32
  }
  func.func @transform_2(%arg0: i32, %arg1: i32, %arg2: memref<1xi32, #tpu.memory_space<smem>>) -> (i32, i32) {
    %c0_i32 = arith.constant 0 : i32
    %c0_i32_0 = arith.constant 0 : i32
    return %arg0, %c0_i32 : i32, i32
  }
}

</mosaic_0001>

<llo_original>
// kernel: tpu_custom_call.1
$region0: #{tpu_custom_call.1}
  #allocation0 [shape = 'u32[]', space=smem, size = 0x4, offset = 0x4, fixed_abs, tag = 'smem constant byte address 0x4 - core index']
  #allocation1 [shape = 'u32[144,128]{1,0:T(1,128)}', space=vmem, size = 0x12000, scoped, tag = 'internal scratch']
  #allocation2 [shape = 'f32[8,128]{1,0:T(8,128)}', space=vmem, size = 0x1000, scoped, tag = 'scratch operand']
  #allocation3 [shape = 'f32[8,128]{1,0:T(8,128)}', space=vmem, size = 0x1000, scoped, tag = 'scratch operand']
  #allocation4 [shape = 's32[1]{0}', space=sflag, size = 0x4, scoped, tag = 'scoped memory for tpu_custom_call.1']
  #allocation5 [shape = 's32[1]{0:T(128)S(6)}', space=smem, size = 0x200, scoped, tag = 'prefetched SMEM operand 0']
  %s0 = inlined_call_operand.<no memory space> [shape: s32[1], index: 0, kind: input, shape index: {}]
  %s1 = inlined_call_operand.hbm [shape: f32[16,128], index: 1, kind: input, shape index: {}]
  %s2 = inlined_call_operand.hbm [shape: f32[16,128], index: 2, kind: input, shape index: {}]
  %s3 = inlined_call_operand.hbm [shape: f32[1,2], index: 3, kind: output, shape index: {}]
  %s4 = sld [smem:[#allocation0]]
  $region42: #{tpu_custom_call.1} parent=0
    _
  %s6 = ssub.s32 1, %s4
  %s7 = scalar_select 0, %s6, %s4
  %8 = sst [smem:[#allocation5]] %s0
  $region1: #{tpu_custom_call.1} parent=0
    #allocation6 [shape = 'u8[8192]{0}', space=vmem, size = 0x2000, scoped, tag = 'input window, operand 1, single buffered']
    #allocation7 [shape = 's32[1]{0}', space=sflag, size = 0x4, scoped, tag = 'scoped memory for tpu_custom_call.1']
    #allocation8 [shape = 's32[1]{0}', space=sflag, size = 0x4, scoped, tag = 'scoped memory for tpu_custom_call.1']
    #allocation9 [shape = 'u8[8192]{0}', space=vmem, size = 0x2000, scoped, tag = 'input window, operand 2, single buffered']
    #allocation10 [shape = 's32[1]{0}', space=sflag, size = 0x4, scoped, tag = 'scoped memory for tpu_custom_call.1']
    #allocation11 [shape = 'u8[512]{0}', space=smem, size = 0x200, scoped, tag = 'output window, operand 0, single buffered']
    %9 = vsyncpa [#allocation7], 0
    %10 = vsyncpa [#allocation10], 0
    %11 = vsyncpa [#allocation8], 0
    // Predicated region
    $region2: #{tpu_custom_call.1} parent=1 // pred_check
      _
    $region3: #{tpu_custom_call.1} parent=1 // pred_check_branch
      %13 = sbr.rel (0) target = $region5
    $region4: #{tpu_custom_call.1} parent=1 // pred_region
      %s14 = sadd.s32 0, 0
      %p15 = scmp.lt.s32.totalorder %s14, 0
      %s16 = scalar_select %p15, %s14, 0
      %s17 = smul.u32 2, %s16
      %s19 = ssub.s32 256, 256
      %20 = vsyncadd [#allocation7], %s19
      %s21 = smul.addr %s17, 128
      %s22 = scalar_lea.hbm %s1, %s21
      %s23 = sshll.u32 [#allocation6], 4
      %s24 = int_to_ptr.vmem [resolvable:$true] %s23
      %29 = dma.hbm_to_vmem [thread:$0]  %s22, 256, %s24, [#allocation7], 128, 128, 8
    $region5: #{tpu_custom_call.1} parent=1 // pred_fallthru
      _
    // Predicated region
    $region6: #{tpu_custom_call.1} parent=1 // pred_check
      _
    $region7: #{tpu_custom_call.1} parent=1 // pred_check_branch
      %31 = sbr.rel (0) target = $region9
    $region8: #{tpu_custom_call.1} parent=1 // pred_region
      %s32 = sadd.s32 0, 0
      %p33 = scmp.lt.s32.totalorder %s32, 0
      %s34 = scalar_select %p33, %s32, 0
      %s35 = smul.u32 2, %s34
      %s37 = ssub.s32 256, 256
      %38 = vsyncadd [#allocation10], %s37
      %s39 = smul.addr %s35, 128
      %s40 = scalar_lea.hbm %s2, %s39
      %s41 = sshll.u32 [#allocation9], 4
      %s42 = int_to_ptr.vmem [resolvable:$true] %s41
      %47 = dma.hbm_to_vmem [thread:$0]  %s40, 256, %s42, [#allocation10], 128, 128, 8
    $region9: #{tpu_custom_call.1} parent=1 // pred_fallthru
      _
    // Predicated region
    $region10: #{tpu_custom_call.1} parent=1 // pred_check
      _
    $region11: #{tpu_custom_call.1} parent=1 // pred_check_branch
      %49 = sbr.rel (0) target = $region13
    $region12: #{tpu_custom_call.1} parent=1 // pred_region
      %50 = dma.done [#allocation7], 256
    $region13: #{tpu_custom_call.1} parent=1 // pred_fallthru
      _
    // Predicated region
    $region14: #{tpu_custom_call.1} parent=1 // pred_check
      _
    $region15: #{tpu_custom_call.1} parent=1 // pred_check_branch
      %52 = sbr.rel (0) target = $region17
    $region16: #{tpu_custom_call.1} parent=1 // pred_region
      %53 = dma.done [#allocation10], 256
    $region17: #{tpu_custom_call.1} parent=1 // pred_fallthru
      _
    %s54 = sadd.s32 0, 0
    %p55 = scmp.lt.s32.totalorder %s54, 0
    %s56 = scalar_select %p55, %s54, 0
    %s57 = smul.u32 2, %s56
    %s58 = sadd.s32 0, 0
    %p59 = scmp.lt.s32.totalorder %s58, 0
    %s60 = scalar_select %p59, %s58, 0
    %s61 = smul.u32 2, %s60
    %p62 = scmp.eq.s32.totalorder 0, 0
    // Predicated region
    $region18: #{tpu_custom_call.1} parent=1 // pred_check
      %p63 = pneg %p62
    $region19: #{tpu_custom_call.1} parent=1 // pred_check_branch
      %65 = sbr.rel (%p63) target = $region21
    $region20: #{tpu_custom_call.1} parent=1 // pred_region
      %66 = vst [vmem:[#allocation2] sm:$0xff] 0.0
      %67 = vst [vmem:[#allocation3] sm:$0xff] 0.0
    $region21: #{tpu_custom_call.1} parent=1 // pred_fallthru
      _
    %s68 = sld [smem:[#allocation5]]
    %s69 = sadd.s32 0, 0
    %s70 = smul.u32 %s69, 2048
    %s71 = ssub.s32 %s68, %s70
    %p72 = scmp.ge.s32.totalorder %s71, 2048
    // Predicated region
    $region22: #{tpu_custom_call.1} parent=1 // pred_check
      %p73 = pneg %p72
    $region23: #{tpu_custom_call.1} parent=1 // pred_check_branch
      %75 = sbr.rel (%p73) target = $region25
    $region24: #{tpu_custom_call.1} parent=1 // pred_region
      %v76 = vld [vmem:[#allocation6] sm:$0xff]
      %v77 = vld [vmem:[#allocation6 + $0x8] sm:$0xff]
      %v78 = vmul.f32 %v76, 0.5
      %v79 = vmul.f32 %v77, 0.5
      %v80 = vtanh.pop %v78
      %v81 = vtanh.pop %v79
      %v82 = vmul.f32 %v80, 0.5
      %v83 = vmul.f32 %v81, 0.5
      %v84 = vadd.f32 %v82, 0.5
      %v85 = vadd.f32 %v83, 0.5
      %v86 = vld [vmem:[#allocation9] sm:$0xff]
      %v87 = vld [vmem:[#allocation9 + $0x8] sm:$0xff]
      %vm88 = vcmp.lt.f32.partialorder %v86, 0.0
      %vm89 = vcmp.lt.f32.partialorder %v87, 0.0
      %v90 = vceil.f32 %v86
      %v91 = vceil.f32 %v87
      %v92 = vfloor.f32 %v86
      %v93 = vfloor.f32 %v87
      %v94 = vsel %vm88, %v90, %v92
      %v95 = vsel %vm89, %v91, %v93
      %v96 = vld [vmem:[#allocation2] sm:$0xff]
      %v97 = vmul.f32 %v84, %v94
      %v98 = vmul.f32 %v85, %v95
      %v99 = vadd.f32 %v97, %v98
      %v100 = vadd.f32 %v96, %v99
      %101 = vst [vmem:[#allocation2] sm:$0xff] %v100
      %v102 = vld [vmem:[#allocation3] sm:$0xff]
      %v103 = vadd.f32 %v84, %v94
      %v104 = vadd.f32 %v85, %v95
      %v105 = vadd.f32 %v103, %v104
      %v106 = vadd.f32 %v102, %v105
      %107 = vst [vmem:[#allocation3] sm:$0xff] %v106
    $region25: #{tpu_custom_call.1} parent=1 // pred_fallthru
      _
    %p108 = scmp.lt.s32.totalorder %s71, 2048
    // Predicated region
    $region26: #{tpu_custom_call.1} parent=1 // pred_check
      %p109 = pneg %p108
    $region27: #{tpu_custom_call.1} parent=1 // pred_check_branch
      %111 = sbr.rel (%p109) target = $region29
    $region28: #{tpu_custom_call.1} parent=1 // pred_region
      %v112 = vld [vmem:[#allocation6] sm:$0xff]
      %v113 = vld [vmem:[#allocation6 + $0x8] sm:$0xff]
      %v114 = vmul.f32 %v112, 0.5
      %v115 = vmul.f32 %v113, 0.5
      %v116 = vtanh.pop %v114
      %v117 = vtanh.pop %v115
      %v118 = vmul.f32 %v116, 0.5
      %v119 = vmul.f32 %v117, 0.5
      %v120 = vadd.f32 %v118, 0.5
      %v121 = vadd.f32 %v119, 0.5
      %v122 = vld [vmem:[#allocation9] sm:$0xff]
      %v123 = vld [vmem:[#allocation9 + $0x8] sm:$0xff]
      %vm124 = vcmp.lt.f32.partialorder %v122, 0.0
      %vm125 = vcmp.lt.f32.partialorder %v123, 0.0
      %v126 = vceil.f32 %v122
      %v127 = vceil.f32 %v123
      %v128 = vfloor.f32 %v122
      %v129 = vfloor.f32 %v123
      %v130 = vsel %vm124, %v126, %v128
      %v131 = vsel %vm125, %v127, %v129
      %v132 = vlaneseq
      %v133 = vshrl.u32 %v132, 7
      %v134 = vadd.s32 %v133, 8
      %v135 = vlaneseq
      %v136 = vand.u32 %v135, 127
      %v137 = vmul.u32 %v133, 128
      %v138 = vmul.u32 %v134, 128
      %v139 = vadd.s32 %v137, %v136
      %v140 = vadd.s32 %v138, %v136
      %v141 = vstv %s71
      %vm142 = vcmp.lt.s32.totalorder %v139, %v141
      %vm143 = vcmp.lt.s32.totalorder %v140, %v141
      %v144 = vsel %vm142, %v120, 0.0
      %v145 = vsel %vm143, %v121, 0.0
      %v146 = vsel %vm142, %v130, 0.0
      %v147 = vsel %vm143, %v131, 0.0
      %v148 = vld [vmem:[#allocation2] sm:$0xff]
      %v149 = vmul.f32 %v144, %v146
      %v150 = vmul.f32 %v145, %v147
      %v151 = vadd.f32 %v149, %v150
      %v152 = vadd.f32 %v148, %v151
      %153 = vst [vmem:[#allocation2] sm:$0xff] %v152
      %v154 = vld [vmem:[#allocation3] sm:$0xff]
      %v155 = vadd.f32 %v144, %v146
      %v156 = vadd.f32 %v145, %v147
      %v157 = vadd.f32 %v155, %v156
      %v158 = vadd.f32 %v154, %v157
      %159 = vst [vmem:[#allocation3] sm:$0xff] %v158
    $region29: #{tpu_custom_call.1} parent=1 // pred_fallthru
      _
    // Predicated region
    $region30: #{tpu_custom_call.1} parent=1 // pred_check
      %p160 = pneg %p62
    $region31: #{tpu_custom_call.1} parent=1 // pred_check_branch
      %162 = sbr.rel (%p160) target = $region33
    $region32: #{tpu_custom_call.1} parent=1 // pred_region
      %v163 = vld [vmem:[#allocation2] sm:$0xff]
      %164 = vadd.xlane.f32.xlu0 %v163
      %v165 = vpop.xlane.xlu0 %164
      %v166 = vrot.slane %v165, 4
      %v167 = vadd.f32 %v165, %v166
      %v168 = vrot.slane %v167, 2
      %v169 = vadd.f32 %v167, %v168
      %v170 = vrot.slane %v169, 1
      %v171 = vadd.f32 %v169, %v170
      %s172 = vtos %v171
      %s173 = scalar_lea.smem [#allocation11], 0
      %174 = sst [smem:[%s173]] %s172
      %v175 = vld [vmem:[#allocation3] sm:$0xff]
      %176 = vadd.xlane.f32.xlu0 %v175
      %v177 = vpop.xlane.xlu0 %176
      %v178 = vrot.slane %v177, 4
      %v179 = vadd.f32 %v177, %v178
      %v180 = vrot.slane %v179, 2
      %v181 = vadd.f32 %v179, %v180
      %v182 = vrot.slane %v181, 1
      %v183 = vadd.f32 %v181, %v182
      %s184 = vtos %v183
      %s185 = scalar_lea.smem [#allocation11], 1
      %186 = sst [smem:[%s185]] %s184
    $region33: #{tpu_custom_call.1} parent=1 // pred_fallthru
      _
    // Predicated region
    $region34: #{tpu_custom_call.1} parent=1 // pred_check
      _
    $region35: #{tpu_custom_call.1} parent=1 // pred_check_branch
      %188 = sbr.rel (0) target = $region37
    $region36: #{tpu_custom_call.1} parent=1 // pred_region
      %s190 = ssub.s32 16, 16
      %191 = vsyncadd [#allocation8], %s190
      %194 = dma.smem_to_hbm [#allocation11], 16, %s3, [#allocation8]
    $region37: #{tpu_custom_call.1} parent=1 // pred_fallthru
      _
    // Predicated region
    $region38: #{tpu_custom_call.1} parent=1 // pred_check
      _
    $region39: #{tpu_custom_call.1} parent=1 // pred_check_branch
      %196 = sbr.rel (0) target = $region41
    $region40: #{tpu_custom_call.1} parent=1 // pred_region
      %197 = dma.done [#allocation8], 16
    $region41: #{tpu_custom_call.1} parent=1 // pred_fallthru
      _
    %198 = sfence
    %199 = vsyncpa [#allocation7], 1
    %200 = vsyncpa [#allocation10], 1
    %201 = vsyncpa [#allocation8], 1

</llo_original>
